<compile_context>
chip_gen: v7x
topology: tpu7x:2x2x1
jax: 0.10.0
libtpu: 0.0.40
codegen_flags: <defaults>
</compile_context>

<pallas_src>
import functools

import jax
import jax.numpy as jnp
import numpy as np
from jax.experimental import pallas as pl
from jax.experimental.pallas import tpu as pltpu


# ------------------------------ Pallas kernel -------------------------------

def _sigmoid(x):
    # logistic; large |x| saturates correctly (exp overflow -> 0/1)
    return 1.0 / (1.0 + jnp.exp(-x))


def _gru_kernel(x_ref, h_ref, wx_ref, wh_ref, b_ref, *rest,
                size, update_bias, norm):
    """Fully fused GRU cell on one (block_b, ...) batch tile.

    x_ref : (block_b, inp)        inputs tile
    h_ref : (block_b, size)       previous state tile
    wx_ref: (inp,  3*size)        input->gates weights   (pre-transposed)
    wh_ref: (size, 3*size)        state->gates weights   (pre-transposed)
    b_ref : (1, 3*size)           bias
    rest  : (ln_w, ln_b, o_ref) if norm else (o_ref,)
    """
    if norm:
        ln_w_ref, ln_b_ref, o_ref = rest
    else:
        (o_ref,) = rest

    # Both matmuls of the (implicit) concat -- MXU, f32 accumulate.
    parts = (
        jnp.dot(x_ref[...], wx_ref[...], preferred_element_type=jnp.float32)
        + jnp.dot(h_ref[...], wh_ref[...], preferred_element_type=jnp.float32)
        + b_ref[...]
    )

    if norm:  # LayerNorm over the full 3*size gate dimension (torch eps=1e-5)
        mu = jnp.mean(parts, axis=-1, keepdims=True)
        var = jnp.mean((parts - mu) ** 2, axis=-1, keepdims=True)
        parts = (parts - mu) * jax.lax.rsqrt(var + 1e-5)
        parts = parts * ln_w_ref[...] + ln_b_ref[...]

    reset = _sigmoid(parts[:, :size])
    cand = parts[:, size:2 * size]
    update = _sigmoid(parts[:, 2 * size:] + update_bias)

    # TODO(synk): the `act` constructor argument is fixed to the torch default
    # nn.Tanh; arbitrary activation modules are not representable generically.
    cand = jnp.tanh(reset * cand)

    h = h_ref[...].astype(jnp.float32)
    out = update * cand + (1.0 - update) * h
    o_ref[...] = out.astype(o_ref.dtype)


# --------------------------------- wrapper ----------------------------------

def _round_up(x, m):
    return ((x + m - 1) // m) * m


def gru_cell(inputs, state, w, b, *, update_bias=-1.0, norm=False,
             ln_w=None, ln_b=None, block_b=None):
    """Pallas GRU cell forward.

    inputs : (B, inp_size)
    state  : (B, size) array, or [state] list as in the torch module
    w      : (3*size, inp_size + size)   torch nn.Linear weight layout
    b      : (3*size,)                   torch nn.Linear bias
    ln_w/ln_b : (3*size,) LayerNorm affine params (only used if norm=True)

    Returns (output, [output]) exactly like the torch module.
    """
    if isinstance(state, (list, tuple)):
        state = state[0]
    B, inp = inputs.shape
    size = state.shape[-1]
    assert w.shape == (3 * size, inp + size)

    # Layout glue (XLA, negligible): split & transpose the concat weight.
    wx = jnp.transpose(w[:, :inp])   # (inp,  3*size)
    wh = jnp.transpose(w[:, inp:])   # (size, 3*size)
    b2 = b.reshape(1, 3 * size)

    # Batch row tile: sublane-aligned, sharded "parallel" across cores.
    if block_b is None:
        block_b = min(256, _round_up(B, 8))
    Bp = _round_up(B, block_b)
    pad = Bp - B
    x = jnp.pad(inputs, ((0, pad), (0, 0))) if pad else inputs
    h = jnp.pad(state, ((0, pad), (0, 0))) if pad else state

    operands = [x, h, wx, wh, b2]
    in_specs = [
        pl.BlockSpec((block_b, inp), lambda i: (i, 0)),
        pl.BlockSpec((block_b, size), lambda i: (i, 0)),
        pl.BlockSpec((inp, 3 * size), lambda i: (0, 0)),
        pl.BlockSpec((size, 3 * size), lambda i: (0, 0)),
        pl.BlockSpec((1, 3 * size), lambda i: (0, 0)),
    ]
    if norm:
        operands += [ln_w.reshape(1, 3 * size), ln_b.reshape(1, 3 * size)]
        in_specs += [pl.BlockSpec((1, 3 * size), lambda i: (0, 0))] * 2

    out = pl.pallas_call(
        functools.partial(_gru_kernel, size=size,
                          update_bias=float(update_bias), norm=norm),
        out_shape=jax.ShapeDtypeStruct((Bp, size), inputs.dtype),
        grid=(Bp // block_b,),
        in_specs=in_specs,
        out_specs=pl.BlockSpec((block_b, size), lambda i: (i, 0)),
        compiler_params=pltpu.CompilerParams(
            dimension_semantics=("parallel",)),
    )(*operands)

    if pad:
        out = out[:B]
    return out, [out]


def get_initial_state(batch_size, size, dtype=jnp.float32):
    return jnp.zeros((batch_size, size), dtype)


# ----------------------- pure-JAX reference (sanity) ------------------------

def _ref_gru(inputs, state, w, b, *, update_bias=-1.0, norm=False,
             ln_w=None, ln_b=None):
    parts = jnp.concatenate([inputs, state], -1) @ w.T + b
    if norm:
        mu = parts.mean(-1, keepdims=True)
        var = ((parts - mu) ** 2).mean(-1, keepdims=True)
        parts = (parts - mu) / jnp.sqrt(var + 1e-5)
        parts = parts * ln_w + ln_b
    size = state.shape[-1]
    reset = jax.nn.sigmoid(parts[:, :size])
    cand = parts[:, size:2 * size]
    update = jax.nn.sigmoid(parts[:, 2 * size:] + update_bias)
    cand = jnp.tanh(reset * cand)
    return update * cand + (1.0 - update) * state


# ---------------------------------- main ------------------------------------

if __name__ == "__main__":
    B, inp_size, size = 2, 64, 128   # size=128 -> lane-dense gates (3*size=384)

    key = jax.random.PRNGKey(0)
    k1, k2, k3, k4, k5, k6 = jax.random.split(key, 6)
    w = jax.random.normal(k1, (3 * size, inp_size + size), jnp.float32) \
        / np.sqrt(inp_size + size)
    b = 0.1 * jax.random.normal(k2, (3 * size,), jnp.float32)
    inputs = jax.random.normal(k3, (B, inp_size), jnp.float32)
    state = jax.random.normal(k4, (B, size), jnp.float32)
    ln_w = 1.0 + 0.1 * jax.random.normal(k5, (3 * size,), jnp.float32)
    ln_b = 0.1 * jax.random.normal(k6, (3 * size,), jnp.float32)

    # norm=False (torch default)
    out, new_state = gru_cell(inputs, [state], w, b)
    out = jax.block_until_ready(out)
    ref = _ref_gru(inputs, state, w, b)
    np.testing.assert_allclose(np.asarray(out), np.asarray(ref),
                               rtol=2e-3, atol=2e-3)
    assert out.shape == (B, size)
    assert np.allclose(np.asarray(new_state[0]), np.asarray(out))

    # norm=True (LayerNorm over the 3*size gate pre-activations)
    out_n, _ = gru_cell(inputs, [state], w, b, norm=True, ln_w=ln_w, ln_b=ln_b)
    out_n = jax.block_until_ready(out_n)
    ref_n = _ref_gru(inputs, state, w, b, norm=True, ln_w=ln_w, ln_b=ln_b)
    np.testing.assert_allclose(np.asarray(out_n), np.asarray(ref_n),
                               rtol=2e-3, atol=2e-3)

    # initial-state helper matches torch.zeros(batch, size)
    assert np.all(np.asarray(get_initial_state(B, size)) == 0.0)

    print("KERNEL_OK")
</pallas_src>

<mosaic_0001>
module attributes {stable_mosaic.version = 11 : i64} {
  func.func @_gru_kernel(%arg0: i32, %arg1: memref<8x64xf32, #tpu.memory_space<vmem>>, %arg2: memref<8x128xf32, #tpu.memory_space<vmem>>, %arg3: memref<64x384xf32, #tpu.memory_space<vmem>>, %arg4: memref<128x384xf32, #tpu.memory_space<vmem>>, %arg5: memref<1x384xf32, #tpu.memory_space<vmem>>, %arg6: memref<8x128xf32, #tpu.memory_space<vmem>>) attributes {dimension_semantics = [#tpu.dimension_semantics<parallel>], iteration_bounds = array<i64: 1>, scalar_prefetch = 0 : i64, scratch_operands = 0 : i64, tpu.core_type = #tpu.core_type<tc>, window_params = [{transform_indices = @transform_0, window_bounds = array<i64: 8, 64>}, {transform_indices = @transform_1, window_bounds = array<i64: 8, 128>}, {pipeline_mode = #tpu.pipeline_mode<synchronous>, transform_indices = @transform_2, window_bounds = array<i64: 64, 384>}, {pipeline_mode = #tpu.pipeline_mode<synchronous>, transform_indices = @transform_3, window_bounds = array<i64: 128, 384>}, {pipeline_mode = #tpu.pipeline_mode<synchronous>, transform_indices = @transform_4, window_bounds = array<i64: 1, 384>}, {transform_indices = @transform_5, window_bounds = array<i64: 8, 128>}]} {
    %c0 = arith.constant 0 : index
    %c0_0 = arith.constant 0 : index
    %0 = vector.load %arg1[%c0, %c0_0] : memref<8x64xf32, #tpu.memory_space<vmem>>, vector<8x64xf32>
    %c0_1 = arith.constant 0 : index
    %c0_2 = arith.constant 0 : index
    %1 = vector.load %arg3[%c0_1, %c0_2] : memref<64x384xf32, #tpu.memory_space<vmem>>, vector<64x384xf32>
    %cst = arith.constant dense<0.000000e+00> : vector<8x384xf32>
    %2 = tpu.matmul %0, %1, %cst {dimension_numbers = #tpu.dot_dimension_numbers<[1], [0], [0], [1], [0, 0, 1, 1], [], []>} : vector<8x64xf32>, vector<64x384xf32>, vector<8x384xf32> -> vector<8x384xf32>
    %c0_3 = arith.constant 0 : index
    %c0_4 = arith.constant 0 : index
    %3 = vector.load %arg2[%c0_3, %c0_4] : memref<8x128xf32, #tpu.memory_space<vmem>>, vector<8x128xf32>
    %c0_5 = arith.constant 0 : index
    %c0_6 = arith.constant 0 : index
    %4 = vector.load %arg4[%c0_5, %c0_6] : memref<128x384xf32, #tpu.memory_space<vmem>>, vector<128x384xf32>
    %cst_7 = arith.constant dense<0.000000e+00> : vector<8x384xf32>
    %5 = tpu.matmul %3, %4, %cst_7 {dimension_numbers = #tpu.dot_dimension_numbers<[1], [0], [0], [1], [0, 0, 1, 1], [], []>} : vector<8x128xf32>, vector<128x384xf32>, vector<8x384xf32> -> vector<8x384xf32>
    %6 = arith.addf %2, %5 : vector<8x384xf32>
    %c0_8 = arith.constant 0 : index
    %c0_9 = arith.constant 0 : index
    %7 = vector.load %arg5[%c0_8, %c0_9] : memref<1x384xf32, #tpu.memory_space<vmem>>, vector<1x384xf32>
    %8 = vector.broadcast %7 : vector<1x384xf32> to vector<8x384xf32>
    %9 = arith.addf %6, %8 : vector<8x384xf32>
    %10 = vector.extract_strided_slice %9 {offsets = [0, 0], sizes = [8, 128], strides = [1, 1]} : vector<8x384xf32> to vector<8x128xf32>
    %cst_10 = arith.constant 0.000000e+00 : f32
    %11 = vector.broadcast %cst_10 : f32 to vector<8x128xf32>
    %12 = arith.subf %11, %10 : vector<8x128xf32>
    %13 = math.exp %12 : vector<8x128xf32>
    %cst_11 = arith.constant 1.000000e+00 : f32
    %14 = vector.broadcast %cst_11 : f32 to vector<8x128xf32>
    %15 = arith.addf %14, %13 : vector<8x128xf32>
    %cst_12 = arith.constant 1.000000e+00 : f32
    %16 = vector.broadcast %cst_12 : f32 to vector<8x128xf32>
    %17 = arith.divf %16, %15 : vector<8x128xf32>
    %18 = vector.extract_strided_slice %9 {offsets = [0, 128], sizes = [8, 128], strides = [1, 1]} : vector<8x384xf32> to vector<8x128xf32>
    %19 = vector.extract_strided_slice %9 {offsets = [0, 256], sizes = [8, 128], strides = [1, 1]} : vector<8x384xf32> to vector<8x128xf32>
    %cst_13 = arith.constant -1.000000e+00 : f32
    %20 = vector.broadcast %cst_13 : f32 to vector<8x128xf32>
    %21 = arith.addf %19, %20 : vector<8x128xf32>
    %cst_14 = arith.constant 0.000000e+00 : f32
    %22 = vector.broadcast %cst_14 : f32 to vector<8x128xf32>
    %23 = arith.subf %22, %21 : vector<8x128xf32>
    %24 = math.exp %23 : vector<8x128xf32>
    %cst_15 = arith.constant 1.000000e+00 : f32
    %25 = vector.broadcast %cst_15 : f32 to vector<8x128xf32>
    %26 = arith.addf %25, %24 : vector<8x128xf32>
    %cst_16 = arith.constant 1.000000e+00 : f32
    %27 = vector.broadcast %cst_16 : f32 to vector<8x128xf32>
    %28 = arith.divf %27, %26 : vector<8x128xf32>
    %29 = arith.mulf %17, %18 : vector<8x128xf32>
    %30 = math.tanh %29 : vector<8x128xf32>
    %c0_17 = arith.constant 0 : index
    %c0_18 = arith.constant 0 : index
    %31 = vector.load %arg2[%c0_17, %c0_18] : memref<8x128xf32, #tpu.memory_space<vmem>>, vector<8x128xf32>
    %32 = arith.mulf %28, %30 : vector<8x128xf32>
    %cst_19 = arith.constant 1.000000e+00 : f32
    %33 = vector.broadcast %cst_19 : f32 to vector<8x128xf32>
    %34 = arith.subf %33, %28 : vector<8x128xf32>
    %35 = arith.mulf %34, %31 : vector<8x128xf32>
    %36 = arith.addf %32, %35 : vector<8x128xf32>
    %c0_20 = arith.constant 0 : index
    %c0_21 = arith.constant 0 : index
    %37 = vector.load %arg6[%c0_20, %c0_21] : memref<8x128xf32, #tpu.memory_space<vmem>>, vector<8x128xf32>
    tpu.vector_store %arg6[%c0_20, %c0_21], %36 {strides = array<i32>} : memref<8x128xf32, #tpu.memory_space<vmem>>, vector<8x128xf32>,
    return
  }
  func.func @transform_0(%arg0: i32) -> (i32, i32) {
    %c0_i32 = arith.constant 0 : i32
    %c0_i32_0 = arith.constant 0 : i32
    return %arg0, %c0_i32 : i32, i32
  }
  func.func @transform_1(%arg0: i32) -> (i32, i32) {
    %c0_i32 = arith.constant 0 : i32
    %c0_i32_0 = arith.constant 0 : i32
    return %arg0, %c0_i32 : i32, i32
  }
  func.func @transform_2(%arg0: i32) -> (i32, i32) {
    %c0_i32 = arith.constant 0 : i32
    %c0_i32_0 = arith.constant 0 : i32
    %c0_i32_1 = arith.constant 0 : i32
    return %c0_i32, %c0_i32_0 : i32, i32
  }
  func.func @transform_3(%arg0: i32) -> (i32, i32) {
    %c0_i32 = arith.constant 0 : i32
    %c0_i32_0 = arith.constant 0 : i32
    %c0_i32_1 = arith.constant 0 : i32
    return %c0_i32, %c0_i32_0 : i32, i32
  }
  func.func @transform_4(%arg0: i32) -> (i32, i32) {
    %c0_i32 = arith.constant 0 : i32
    %c0_i32_0 = arith.constant 0 : i32
    %c0_i32_1 = arith.constant 0 : i32
    return %c0_i32, %c0_i32_0 : i32, i32
  }
  func.func @transform_5(%arg0: i32) -> (i32, i32) {
    %c0_i32 = arith.constant 0 : i32
    %c0_i32_0 = arith.constant 0 : i32
    return %arg0, %c0_i32 : i32, i32
  }
}

</mosaic_0001>

<llo_original>
// kernel: tpu_custom_call.1
$region0: #{tpu_custom_call.1}
  #allocation0 [shape = 'u32[]', space=smem, size = 0x4, offset = 0x4, fixed_abs, tag = 'smem constant byte address 0x4 - core index']
  #allocation1 [shape = 'u32[144,128]{1,0:T(1,128)}', space=vmem, size = 0x12000, scoped, tag = 'internal scratch']
  %s0 = inlined_call_operand.hbm [shape: f32[8,64], index: 0, kind: input, shape index: {}]
  %s1 = inlined_call_operand.hbm [shape: f32[8,128], index: 1, kind: input, shape index: {}]
  %s2 = inlined_call_operand.hbm [shape: f32[64,384], index: 2, kind: input, shape index: {}]
  %s3 = inlined_call_operand.hbm [shape: f32[128,384], index: 3, kind: input, shape index: {}]
  %s4 = inlined_call_operand.vmem [shape: f32[1,384], index: 4, kind: input, shape index: {}]
  %s5 = inlined_call_operand.hbm [shape: f32[8,128], index: 5, kind: output, shape index: {}]
  %s6 = sld [smem:[#allocation0]]
  $region46: #{tpu_custom_call.1} parent=0
    _
  %s8 = ssub.s32 1, %s6
  %s9 = scalar_select 0, %s8, %s6
  $region1: #{tpu_custom_call.1} parent=0
    #allocation2 [shape = 'u8[4096]{0}', space=vmem, size = 0x1000, scoped, tag = 'input window, operand 0, single buffered']
    #allocation3 [shape = 's32[1]{0}', space=sflag, size = 0x4, scoped, tag = 'scoped memory for tpu_custom_call.1']
    #allocation4 [shape = 's32[1]{0}', space=sflag, size = 0x4, scoped, tag = 'scoped memory for tpu_custom_call.1']
    #allocation5 [shape = 'u8[4096]{0}', space=vmem, size = 0x1000, scoped, tag = 'input window, operand 1, single buffered']
    #allocation6 [shape = 's32[1]{0}', space=sflag, size = 0x4, scoped, tag = 'scoped memory for tpu_custom_call.1']
    #allocation7 [shape = 'u8[98304]{0}', space=vmem, size = 0x18000, scoped, tag = 'input window, operand 2, single buffered']
    #allocation8 [shape = 'u8[196608]{0}', space=vmem, size = 0x30000, scoped, tag = 'input window, operand 3, single buffered']
    #allocation9 [shape = 's32[1]{0}', space=sflag, size = 0x4, scoped, tag = 'scoped memory for tpu_custom_call.1']
    #allocation10 [shape = 'u8[4096]{0}', space=vmem, size = 0x1000, scoped, tag = 'output window, operand 0, single buffered']
    %10 = vsyncpa [#allocation3], 0
    %11 = vsyncpa [#allocation6], 0
    %12 = vsyncpa [#allocation9], 0
    %13 = vsyncpa [#allocation4], 0
    // Predicated region
    $region2: #{tpu_custom_call.1} parent=1 // pred_check
      _
    $region3: #{tpu_custom_call.1} parent=1 // pred_check_branch
      %15 = sbr.rel (0) target = $region5
    $region4: #{tpu_custom_call.1} parent=1 // pred_region
      %s17 = ssub.s32 128, 128
      %18 = vsyncadd [#allocation3], %s17
      %s20 = sshll.u32 [#allocation2], 4
      %s21 = int_to_ptr.vmem [resolvable:$true] %s20
      %23 = dma.hbm_to_vmem [thread:$0]  %s0, 128, %s21, [#allocation3]
    $region5: #{tpu_custom_call.1} parent=1 // pred_fallthru
      _
    // Predicated region
    $region6: #{tpu_custom_call.1} parent=1 // pred_check
      _
    $region7: #{tpu_custom_call.1} parent=1 // pred_check_branch
      %25 = sbr.rel (0) target = $region9
    $region8: #{tpu_custom_call.1} parent=1 // pred_region
      %s27 = ssub.s32 128, 128
      %28 = vsyncadd [#allocation6], %s27
      %s30 = sshll.u32 [#allocation5], 4
      %s31 = int_to_ptr.vmem [resolvable:$true] %s30
      %33 = dma.hbm_to_vmem [thread:$0]  %s1, 128, %s31, [#allocation6]
    $region9: #{tpu_custom_call.1} parent=1 // pred_fallthru
      _
    // Predicated region
    $region10: #{tpu_custom_call.1} parent=1 // pred_check
      _
    $region11: #{tpu_custom_call.1} parent=1 // pred_check_branch
      %35 = sbr.rel (0) target = $region13
    $region12: #{tpu_custom_call.1} parent=1 // pred_region
      %s37 = ssub.s32 3072, 3072
      %38 = vsyncadd [#allocation6], %s37
      %s39 = sshll.u32 [#allocation7], 4
      %s40 = int_to_ptr.vmem [resolvable:$true] %s39
      %45 = dma.hbm_to_vmem [thread:$0]  %s2, 3072, %s40, [#allocation6], 384, 384, 24
    $region13: #{tpu_custom_call.1} parent=1 // pred_fallthru
      _
    // Predicated region
    $region14: #{tpu_custom_call.1} parent=1 // pred_check
      _
    $region15: #{tpu_custom_call.1} parent=1 // pred_check_branch
      %47 = sbr.rel (0) target = $region17
    $region16: #{tpu_custom_call.1} parent=1 // pred_region
      %s49 = ssub.s32 6144, 6144
      %50 = vsyncadd [#allocation9], %s49
      %s51 = sshll.u32 [#allocation8], 4
      %s52 = int_to_ptr.vmem [resolvable:$true] %s51
      %57 = dma.hbm_to_vmem [thread:$0]  %s3, 6144, %s52, [#allocation9], 384, 384, 24
    $region17: #{tpu_custom_call.1} parent=1 // pred_fallthru
      _
    // Predicated region
    $region18: #{tpu_custom_call.1} parent=1 // pred_check
      _
    $region19: #{tpu_custom_call.1} parent=1 // pred_check_branch
      %59 = sbr.rel (0) target = $region21
    $region20: #{tpu_custom_call.1} parent=1 // pred_region
      _
    $region21: #{tpu_custom_call.1} parent=1 // pred_fallthru
      _
    // Predicated region
    $region22: #{tpu_custom_call.1} parent=1 // pred_check
      _
    $region23: #{tpu_custom_call.1} parent=1 // pred_check_branch
      %61 = sbr.rel (0) target = $region25
    $region24: #{tpu_custom_call.1} parent=1 // pred_region
      %62 = dma.done [#allocation3], 128
    $region25: #{tpu_custom_call.1} parent=1 // pred_fallthru
      _
    // Predicated region
    $region26: #{tpu_custom_call.1} parent=1 // pred_check
      _
    $region27: #{tpu_custom_call.1} parent=1 // pred_check_branch
      %64 = sbr.rel (0) target = $region29
    $region28: #{tpu_custom_call.1} parent=1 // pred_region
      %65 = dma.done [#allocation6], 128
    $region29: #{tpu_custom_call.1} parent=1 // pred_fallthru
      _
    // Predicated region
    $region30: #{tpu_custom_call.1} parent=1 // pred_check
      _
    $region31: #{tpu_custom_call.1} parent=1 // pred_check_branch
      %67 = sbr.rel (0) target = $region33
    $region32: #{tpu_custom_call.1} parent=1 // pred_region
      %68 = dma.done [#allocation6], 3072
    $region33: #{tpu_custom_call.1} parent=1 // pred_fallthru
      _
    // Predicated region
    $region34: #{tpu_custom_call.1} parent=1 // pred_check
      _
    $region35: #{tpu_custom_call.1} parent=1 // pred_check_branch
      %70 = sbr.rel (0) target = $region37
    $region36: #{tpu_custom_call.1} parent=1 // pred_region
      %71 = dma.done [#allocation9], 6144
    $region37: #{tpu_custom_call.1} parent=1 // pred_fallthru
      _
    %v72 = vld [vmem:[#allocation2] sm:$0xff]
    %v73 = vld [vmem:[#allocation7] sm:$0xff]
    %v74 = vld [vmem:[#allocation7 + $0x8] sm:$0xff]
    %v75 = vld [vmem:[#allocation7 + $0x10] sm:$0xff]
    %v76 = vld [vmem:[#allocation7 + $0x18] sm:$0xff]
    %v77 = vld [vmem:[#allocation7 + $0x20] sm:$0xff]
    %v78 = vld [vmem:[#allocation7 + $0x28] sm:$0xff]
    %v79 = vld [vmem:[#allocation7 + $0x30] sm:$0xff]
    %v80 = vld [vmem:[#allocation7 + $0x38] sm:$0xff]
    %v81 = vld [vmem:[#allocation7 + $0x40] sm:$0xff]
    %v82 = vld [vmem:[#allocation7 + $0x48] sm:$0xff]
    %v83 = vld [vmem:[#allocation7 + $0x50] sm:$0xff]
    %v84 = vld [vmem:[#allocation7 + $0x58] sm:$0xff]
    %v85 = vld [vmem:[#allocation7 + $0x60] sm:$0xff]
    %v86 = vld [vmem:[#allocation7 + $0x68] sm:$0xff]
    %v87 = vld [vmem:[#allocation7 + $0x70] sm:$0xff]
    %v88 = vld [vmem:[#allocation7 + $0x78] sm:$0xff]
    %v89 = vld [vmem:[#allocation7 + $0x80] sm:$0xff]
    %v90 = vld [vmem:[#allocation7 + $0x88] sm:$0xff]
    %v91 = vld [vmem:[#allocation7 + $0x90] sm:$0xff]
    %v92 = vld [vmem:[#allocation7 + $0x98] sm:$0xff]
    %v93 = vld [vmem:[#allocation7 + $0xa0] sm:$0xff]
    %v94 = vld [vmem:[#allocation7 + $0xa8] sm:$0xff]
    %v95 = vld [vmem:[#allocation7 + $0xb0] sm:$0xff]
    %v96 = vld [vmem:[#allocation7 + $0xb8] sm:$0xff]
    %v97 = vld [vmem:[#allocation5] sm:$0xff]
    %v98 = vld [vmem:[#allocation8] sm:$0xff]
    %v99 = vld [vmem:[#allocation8 + $0x8] sm:$0xff]
    %v100 = vld [vmem:[#allocation8 + $0x10] sm:$0xff]
    %v101 = vld [vmem:[#allocation8 + $0x18] sm:$0xff]
    %v102 = vld [vmem:[#allocation8 + $0x20] sm:$0xff]
    %v103 = vld [vmem:[#allocation8 + $0x28] sm:$0xff]
    %v104 = vld [vmem:[#allocation8 + $0x30] sm:$0xff]
    %v105 = vld [vmem:[#allocation8 + $0x38] sm:$0xff]
    %v106 = vld [vmem:[#allocation8 + $0x40] sm:$0xff]
    %v107 = vld [vmem:[#allocation8 + $0x48] sm:$0xff]
    %v108 = vld [vmem:[#allocation8 + $0x50] sm:$0xff]
    %v109 = vld [vmem:[#allocation8 + $0x58] sm:$0xff]
    %v110 = vld [vmem:[#allocation8 + $0x60] sm:$0xff]
    %v111 = vld [vmem:[#allocation8 + $0x68] sm:$0xff]
    %v112 = vld [vmem:[#allocation8 + $0x70] sm:$0xff]
    %v113 = vld [vmem:[#allocation8 + $0x78] sm:$0xff]
    %v114 = vld [vmem:[#allocation8 + $0x80] sm:$0xff]
    %v115 = vld [vmem:[#allocation8 + $0x88] sm:$0xff]
    %v116 = vld [vmem:[#allocation8 + $0x90] sm:$0xff]
    %v117 = vld [vmem:[#allocation8 + $0x98] sm:$0xff]
    %v118 = vld [vmem:[#allocation8 + $0xa0] sm:$0xff]
    %v119 = vld [vmem:[#allocation8 + $0xa8] sm:$0xff]
    %v120 = vld [vmem:[#allocation8 + $0xb0] sm:$0xff]
    %v121 = vld [vmem:[#allocation8 + $0xb8] sm:$0xff]
    %v122 = vld [vmem:[#allocation8 + $0xc0] sm:$0xff]
    %v123 = vld [vmem:[#allocation8 + $0xc8] sm:$0xff]
    %v124 = vld [vmem:[#allocation8 + $0xd0] sm:$0xff]
    %v125 = vld [vmem:[#allocation8 + $0xd8] sm:$0xff]
    %v126 = vld [vmem:[#allocation8 + $0xe0] sm:$0xff]
    %v127 = vld [vmem:[#allocation8 + $0xe8] sm:$0xff]
    %v128 = vld [vmem:[#allocation8 + $0xf0] sm:$0xff]
    %v129 = vld [vmem:[#allocation8 + $0xf8] sm:$0xff]
    %v130 = vld [vmem:[#allocation8 + $0x100] sm:$0xff]
    %v131 = vld [vmem:[#allocation8 + $0x108] sm:$0xff]
    %v132 = vld [vmem:[#allocation8 + $0x110] sm:$0xff]
    %v133 = vld [vmem:[#allocation8 + $0x118] sm:$0xff]
    %v134 = vld [vmem:[#allocation8 + $0x120] sm:$0xff]
    %v135 = vld [vmem:[#allocation8 + $0x128] sm:$0xff]
    %v136 = vld [vmem:[#allocation8 + $0x130] sm:$0xff]
    %v137 = vld [vmem:[#allocation8 + $0x138] sm:$0xff]
    %v138 = vld [vmem:[#allocation8 + $0x140] sm:$0xff]
    %v139 = vld [vmem:[#allocation8 + $0x148] sm:$0xff]
    %v140 = vld [vmem:[#allocation8 + $0x150] sm:$0xff]
    %v141 = vld [vmem:[#allocation8 + $0x158] sm:$0xff]
    %v142 = vld [vmem:[#allocation8 + $0x160] sm:$0xff]
    %v143 = vld [vmem:[#allocation8 + $0x168] sm:$0xff]
    %v144 = vld [vmem:[#allocation8 + $0x170] sm:$0xff]
    %v145 = vld [vmem:[#allocation8 + $0x178] sm:$0xff]
    %146 = vmatprep.subr.mxu0 %v99
    %147 = vmatpush1.msra.mxu0 %v98
    %148 = vmatprep.subr.mxu0 %v102
    %149 = vmatpush1.msra.mxu0 %v101
    %150 = vmatprep.subr.mxu0 %v105
    %151 = vmatpush1.msra.mxu0 %v104
    %152 = vmatprep.subr.mxu0 %v108
    %153 = vmatpush1.msra.mxu0 %v107
    %154 = vmatprep.subr.mxu0 %v111
    %155 = vmatpush1.msra.mxu0 %v110
    %156 = vmatprep.subr.mxu0 %v114
    %157 = vmatpush1.msra.mxu0 %v113
    %158 = vmatprep.subr.mxu0 %v117
    %159 = vmatpush1.msra.mxu0 %v116
    %160 = vmatprep.subr.mxu0 %v120
    %161 = vmatpush1.msra.mxu0 %v119
    %162 = vmatprep.subr.mxu0 %v123
    %163 = vmatpush1.msra.mxu0 %v122
    %164 = vmatprep.subr.mxu0 %v126
    %165 = vmatpush1.msra.mxu0 %v125
    %166 = vmatprep.subr.mxu0 %v129
    %167 = vmatpush1.msra.mxu0 %v128
    %168 = vmatprep.subr.mxu0 %v132
    %169 = vmatpush1.msra.mxu0 %v131
    %170 = vmatprep.subr.mxu0 %v135
    %171 = vmatpush1.msra.mxu0 %v134
    %172 = vmatprep.subr.mxu0 %v138
    %173 = vmatpush1.msra.mxu0 %v137
    %174 = vmatprep.subr.mxu0 %v141
    %175 = vmatpush1.msra.mxu0 %v140
    %176 = vmatprep.subr.mxu0 %v144
    %177 = vmatpush1.msra.mxu0 %v143
    %178 = vmatprep.subr.mxu0 0.0
    %179 = vmatpush1.msra.mxu0 0.0
    %180 = vmatprep.subr.mxu0 0.0
    %181 = vmatpush1.msra.mxu0 0.0
    %182 = vmatprep.subr.mxu0 0.0
    %183 = vmatpush1.msra.mxu0 0.0
    %184 = vmatprep.subr.mxu0 0.0
    %185 = vmatpush1.msra.mxu0 0.0
    %186 = vmatprep.subr.mxu0 0.0
    %187 = vmatpush1.msra.mxu0 0.0
    %188 = vmatprep.subr.mxu0 0.0
    %189 = vmatpush1.msra.mxu0 0.0
    %190 = vmatprep.subr.mxu0 0.0
    %191 = vmatpush1.msra.mxu0 0.0
    %192 = vmatprep.subr.mxu0 0.0
    %193 = vmatpush1.msra.mxu0 0.0
    %194 = vmatprep.subr.mxu0 0.0
    %195 = vmatpush1.msra.mxu0 0.0
    %196 = vmatprep.subr.mxu0 0.0
    %197 = vmatpush1.msra.mxu0 0.0
    %198 = vmatprep.subr.mxu0 0.0
    %199 = vmatpush1.msra.mxu0 0.0
    %200 = vmatprep.subr.mxu0 0.0
    %201 = vmatpush1.msra.mxu0 0.0
    %202 = vmatprep.subr.mxu0 0.0
    %203 = vmatpush1.msra.mxu0 0.0
    %204 = vmatprep.subr.mxu0 0.0
    %205 = vmatpush1.msra.mxu0 0.0
    %206 = vmatprep.subr.mxu0 0.0
    %207 = vmatpush1.msra.mxu0 0.0
    %208 = vmatprep.subr.mxu0 0.0
    %209 = vmatpush1.msra.mxu0 0.0
    %210 = vmatprep.mubr.f32.mxu0 0.0
    %211 = vmatmul.mubr.f32.gmra.mrb[0].mxu0 %v97
    %v212 = vpop.f32.mrb[0].mxu0
    %v213 = vadd.f32 0.0, %v212
    %v214 = vpop.f32.mrb[0].mxu0
    %v215 = vadd.f32 0.0, %v214
    %216 = vdwg.mxu0
    %217 = vmatprep.subr.mxu0 0.0
    %218 = vmatpush1.msra.mxu0 %v100
    %219 = vmatprep.subr.mxu0 0.0
    %220 = vmatpush1.msra.mxu0 %v103
    %221 = vmatprep.subr.mxu0 0.0
    %222 = vmatpush1.msra.mxu0 %v106
    %223 = vmatprep.subr.mxu0 0.0
    %224 = vmatpush1.msra.mxu0 %v109
    %225 = vmatprep.subr.mxu0 0.0
    %226 = vmatpush1.msra.mxu0 %v112
    %227 = vmatprep.subr.mxu0 0.0
    %228 = vmatpush1.msra.mxu0 %v115
    %229 = vmatprep.subr.mxu0 0.0
    %230 = vmatpush1.msra.mxu0 %v118
    %231 = vmatprep.subr.mxu0 0.0
    %232 = vmatpush1.msra.mxu0 %v121
    %233 = vmatprep.subr.mxu0 0.0
    %234 = vmatpush1.msra.mxu0 %v124
    %235 = vmatprep.subr.mxu0 0.0
    %236 = vmatpush1.msra.mxu0 %v127
    %237 = vmatprep.subr.mxu0 0.0
    %238 = vmatpush1.msra.mxu0 %v130
    %239 = vmatprep.subr.mxu0 0.0
    %240 = vmatpush1.msra.mxu0 %v133
    %241 = vmatprep.subr.mxu0 0.0
    %242 = vmatpush1.msra.mxu0 %v136
    %243 = vmatprep.subr.mxu0 0.0
    %244 = vmatpush1.msra.mxu0 %v139
    %245 = vmatprep.subr.mxu0 0.0
    %246 = vmatpush1.msra.mxu0 %v142
    %247 = vmatprep.subr.mxu0 0.0
    %248 = vmatpush1.msra.mxu0 %v145
    %249 = vmatprep.subr.mxu0 0.0
    %250 = vmatpush1.msra.mxu0 0.0
    %251 = vmatprep.subr.mxu0 0.0
    %252 = vmatpush1.msra.mxu0 0.0
    %253 = vmatprep.subr.mxu0 0.0
    %254 = vmatpush1.msra.mxu0 0.0
    %255 = vmatprep.subr.mxu0 0.0
    %256 = vmatpush1.msra.mxu0 0.0
    %257 = vmatprep.subr.mxu0 0.0
    %258 = vmatpush1.msra.mxu0 0.0
    %259 = vmatprep.subr.mxu0 0.0
    %260 = vmatpush1.msra.mxu0 0.0
    %261 = vmatprep.subr.mxu0 0.0
    %262 = vmatpush1.msra.mxu0 0.0
    %263 = vmatprep.subr.mxu0 0.0
    %264 = vmatpush1.msra.mxu0 0.0
    %265 = vmatprep.subr.mxu0 0.0
    %266 = vmatpush1.msra.mxu0 0.0
    %267 = vmatprep.subr.mxu0 0.0
    %268 = vmatpush1.msra.mxu0 0.0
    %269 = vmatprep.subr.mxu0 0.0
    %270 = vmatpush1.msra.mxu0 0.0
    %271 = vmatprep.subr.mxu0 0.0
    %272 = vmatpush1.msra.mxu0 0.0
    %273 = vmatprep.subr.mxu0 0.0
    %274 = vmatpush1.msra.mxu0 0.0
    %275 = vmatprep.subr.mxu0 0.0
    %276 = vmatpush1.msra.mxu0 0.0
    %277 = vmatprep.subr.mxu0 0.0
    %278 = vmatpush1.msra.mxu0 0.0
    %279 = vmatprep.subr.mxu0 0.0
    %280 = vmatpush1.msra.mxu0 0.0
    %281 = vmatprep.mubr.f32.mxu0 0.0
    %282 = vmatmul.mubr.f32.gmra.mrb[0].mxu0 %v97
    %v283 = vpop.f32.mrb[0].mxu0
    %v284 = vadd.f32 0.0, %v283
    %v285 = vpop.f32.mrb[0].mxu0
    %286 = vdwg.mxu0
    %vm287 = vcmask 523264
    %v289 = vsel %vm287, %v72, 0
    %291 = vmatprep.subr.mxu0 %v74
    %292 = vmatpush1.msra.mxu0 %v73
    %293 = vmatprep.subr.mxu0 %v77
    %294 = vmatpush1.msra.mxu0 %v76
    %295 = vmatprep.subr.mxu0 %v80
    %296 = vmatpush1.msra.mxu0 %v79
    %297 = vmatprep.subr.mxu0 %v83
    %298 = vmatpush1.msra.mxu0 %v82
    %299 = vmatprep.subr.mxu0 %v86
    %300 = vmatpush1.msra.mxu0 %v85
    %301 = vmatprep.subr.mxu0 %v89
    %302 = vmatpush1.msra.mxu0 %v88
    %303 = vmatprep.subr.mxu0 %v92
    %304 = vmatpush1.msra.mxu0 %v91
    %305 = vmatprep.subr.mxu0 %v95
    %306 = vmatpush1.msra.mxu0 %v94
    %307 = vmatprep.subr.mxu0 0.0
    %308 = vmatpush1.msra.mxu0 0.0
    %309 = vmatprep.subr.mxu0 0.0
    %310 = vmatpush1.msra.mxu0 0.0
    %311 = vmatprep.subr.mxu0 0.0
    %312 = vmatpush1.msra.mxu0 0.0
    %313 = vmatprep.subr.mxu0 0.0
    %314 = vmatpush1.msra.mxu0 0.0
    %315 = vmatprep.subr.mxu0 0.0
    %316 = vmatpush1.msra.mxu0 0.0
    %317 = vmatprep.subr.mxu0 0.0
    %318 = vmatpush1.msra.mxu0 0.0
    %319 = vmatprep.subr.mxu0 0.0
    %320 = vmatpush1.msra.mxu0 0.0
    %321 = vmatprep.subr.mxu0 0.0
    %322 = vmatpush1.msra.mxu0 0.0
    %323 = vmatprep.subr.mxu0 0.0
    %324 = vmatpush1.msra.mxu0 0.0
    %325 = vmatprep.subr.mxu0 0.0
    %326 = vmatpush1.msra.mxu0 0.0
    %327 = vmatprep.subr.mxu0 0.0
    %328 = vmatpush1.msra.mxu0 0.0
    %329 = vmatprep.subr.mxu0 0.0
    %330 = vmatpush1.msra.mxu0 0.0
    %331 = vmatprep.subr.mxu0 0.0
    %332 = vmatpush1.msra.mxu0 0.0
    %333 = vmatprep.subr.mxu0 0.0
    %334 = vmatpush1.msra.mxu0 0.0
    %335 = vmatprep.subr.mxu0 0.0
    %336 = vmatpush1.msra.mxu0 0.0
    %337 = vmatprep.subr.mxu0 0.0
    %338 = vmatpush1.msra.mxu0 0.0
    %339 = vmatprep.subr.mxu0 0.0
    %340 = vmatpush1.msra.mxu0 0.0
    %341 = vmatprep.subr.mxu0 0.0
    %342 = vmatpush1.msra.mxu0 0.0
    %343 = vmatprep.subr.mxu0 0.0
    %344 = vmatpush1.msra.mxu0 0.0
    %345 = vmatprep.subr.mxu0 0.0
    %346 = vmatpush1.msra.mxu0 0.0
    %347 = vmatprep.subr.mxu0 0.0
    %348 = vmatpush1.msra.mxu0 0.0
    %349 = vmatprep.subr.mxu0 0.0
    %350 = vmatpush1.msra.mxu0 0.0
    %351 = vmatprep.subr.mxu0 0.0
    %352 = vmatpush1.msra.mxu0 0.0
    %353 = vmatprep.subr.mxu0 0.0
    %354 = vmatpush1.msra.mxu0 0.0
    %355 = vmatprep.mubr.f32.mxu0 0.0
    %356 = vmatmul.mubr.f32.gmra.mrb[0].mxu0 %v289
    %v357 = vpop.f32.mrb[0].mxu0
    %v358 = vadd.f32 %v213, %v357
    %v359 = vpop.f32.mrb[0].mxu0
    %v360 = vadd.f32 %v215, %v359
    %361 = vdwg.mxu0
    %362 = vmatprep.subr.mxu0 0.0
    %363 = vmatpush1.msra.mxu0 %v75
    %364 = vmatprep.subr.mxu0 0.0
    %365 = vmatpush1.msra.mxu0 %v78
    %366 = vmatprep.subr.mxu0 0.0
    %367 = vmatpush1.msra.mxu0 %v81
    %368 = vmatprep.subr.mxu0 0.0
    %369 = vmatpush1.msra.mxu0 %v84
    %370 = vmatprep.subr.mxu0 0.0
    %371 = vmatpush1.msra.mxu0 %v87
    %372 = vmatprep.subr.mxu0 0.0
    %373 = vmatpush1.msra.mxu0 %v90
    %374 = vmatprep.subr.mxu0 0.0
    %375 = vmatpush1.msra.mxu0 %v93
    %376 = vmatprep.subr.mxu0 0.0
    %377 = vmatpush1.msra.mxu0 %v96
    %378 = vmatprep.subr.mxu0 0.0
    %379 = vmatpush1.msra.mxu0 0.0
    %380 = vmatprep.subr.mxu0 0.0
    %381 = vmatpush1.msra.mxu0 0.0
    %382 = vmatprep.subr.mxu0 0.0
    %383 = vmatpush1.msra.mxu0 0.0
    %384 = vmatprep.subr.mxu0 0.0
    %385 = vmatpush1.msra.mxu0 0.0
    %386 = vmatprep.subr.mxu0 0.0
    %387 = vmatpush1.msra.mxu0 0.0
    %388 = vmatprep.subr.mxu0 0.0
    %389 = vmatpush1.msra.mxu0 0.0
    %390 = vmatprep.subr.mxu0 0.0
    %391 = vmatpush1.msra.mxu0 0.0
    %392 = vmatprep.subr.mxu0 0.0
    %393 = vmatpush1.msra.mxu0 0.0
    %394 = vmatprep.subr.mxu0 0.0
    %395 = vmatpush1.msra.mxu0 0.0
    %396 = vmatprep.subr.mxu0 0.0
    %397 = vmatpush1.msra.mxu0 0.0
    %398 = vmatprep.subr.mxu0 0.0
    %399 = vmatpush1.msra.mxu0 0.0
    %400 = vmatprep.subr.mxu0 0.0
    %401 = vmatpush1.msra.mxu0 0.0
    %402 = vmatprep.subr.mxu0 0.0
    %403 = vmatpush1.msra.mxu0 0.0
    %404 = vmatprep.subr.mxu0 0.0
    %405 = vmatpush1.msra.mxu0 0.0
    %406 = vmatprep.subr.mxu0 0.0
    %407 = vmatpush1.msra.mxu0 0.0
    %408 = vmatprep.subr.mxu0 0.0
    %409 = vmatpush1.msra.mxu0 0.0
    %410 = vmatprep.subr.mxu0 0.0
    %411 = vmatpush1.msra.mxu0 0.0
    %412 = vmatprep.subr.mxu0 0.0
    %413 = vmatpush1.msra.mxu0 0.0
    %414 = vmatprep.subr.mxu0 0.0
    %415 = vmatpush1.msra.mxu0 0.0
    %416 = vmatprep.subr.mxu0 0.0
    %417 = vmatpush1.msra.mxu0 0.0
    %418 = vmatprep.subr.mxu0 0.0
    %419 = vmatpush1.msra.mxu0 0.0
    %420 = vmatprep.subr.mxu0 0.0
    %421 = vmatpush1.msra.mxu0 0.0
    %422 = vmatprep.subr.mxu0 0.0
    %423 = vmatpush1.msra.mxu0 0.0
    %424 = vmatprep.subr.mxu0 0.0
    %425 = vmatpush1.msra.mxu0 0.0
    %426 = vmatprep.mubr.f32.mxu0 0.0
    %427 = vmatmul.mubr.f32.gmra.mrb[0].mxu0 %v289
    %v428 = vpop.f32.mrb[0].mxu0
    %v429 = vadd.f32 %v284, %v428
    %v430 = vpop.f32.mrb[0].mxu0
    %431 = vdwg.mxu0
    %v432 = vld [vmem:[%s4] sm:$0x7]
    %v434 = vlaneseq
    %v435 = vshrl.u32 %v434, 7
    %v436 = vsub.s32 0, %v435
    %v437 = vrot.slane %v432, %v436
    %v438 = vlaneseq
    %v439 = vshrl.u32 %v438, 7
    %v440 = vsub.s32 1, %v439
    %v441 = vrot.slane %v432, %v440
    %v442 = vlaneseq
    %v443 = vshrl.u32 %v442, 7
    %v444 = vsub.s32 2, %v443
    %v445 = vrot.slane %v432, %v444
    %v449 = vadd.f32 %v358, %v437
    %v450 = vadd.f32 %v360, %v441
    %v451 = vadd.f32 %v429, %v445
    %v452 = vsub.f32 0.0, %v449
    %v453 = vmul.f32 %v452, 1.442695
    %v454 = vpow.pop %v453
    %v455 = vadd.f32 %v454, 1.0
    %v456 = vrcp.pop %v455
    %v457 = vmul.f32 1.0, %v456
    %v458 = vadd.f32 %v451, -1.0
    %v459 = vsub.f32 0.0, %v458
    %v460 = vmul.f32 %v459, 1.442695
    %v461 = vpow.pop %v460
    %v462 = vadd.f32 %v461, 1.0
    %v463 = vrcp.pop %v462
    %v464 = vmul.f32 1.0, %v463
    %v465 = vmul.f32 %v457, %v450
    %v466 = vtanh.pop %v465
    %v467 = vmul.f32 %v464, %v466
    %v468 = vsub.f32 1.0, %v464
    %v469 = vmul.f32 %v468, %v97
    %v470 = vadd.f32 %v467, %v469
    %471 = vst [vmem:[#allocation10] sm:$0xff] %v470
    // Predicated region
    $region38: #{tpu_custom_call.1} parent=1 // pred_check
      _
    $region39: #{tpu_custom_call.1} parent=1 // pred_check_branch
      %473 = sbr.rel (0) target = $region41
    $region40: #{tpu_custom_call.1} parent=1 // pred_region
      %s475 = ssub.s32 128, 128
      %476 = vsyncadd [#allocation4], %s475
      %s478 = sshll.u32 [#allocation10], 4
      %s479 = int_to_ptr.vmem [resolvable:$true] %s478
      %481 = dma.vmem_to_hbm [thread:$0]  %s479, 128, %s5, [#allocation4]
    $region41: #{tpu_custom_call.1} parent=1 // pred_fallthru
      _
    // Predicated region
    $region42: #{tpu_custom_call.1} parent=1 // pred_check
      _
    $region43: #{tpu_custom_call.1} parent=1 // pred_check_branch
      %483 = sbr.rel (0) target = $region45
    $region44: #{tpu_custom_call.1} parent=1 // pred_region
      %484 = dma.done [#allocation4], 128
    $region45: #{tpu_custom_call.1} parent=1 // pred_fallthru
      _
    %485 = vsyncpa [#allocation3], 1
    %486 = vsyncpa [#allocation6], 1
    %487 = vsyncpa [#allocation9], 1
    %488 = vsyncpa [#allocation4], 1

</llo_original>
